<compile_context>
chip_gen: v6e
topology: v6e:2x2x1
jax: 0.10.0
libtpu: 0.0.40
codegen_flags: <defaults>
</compile_context>

<pallas_src>
import functools

import jax
import jax.numpy as jnp
from jax import lax
from jax.experimental import pallas as pl
from jax.experimental.pallas import tpu as pltpu


def _round_up(v, m):
    return ((v + m - 1) // m) * m


def _gated_attention_kernel(x_ref, w_ref, b_ref, ww_ref, z_ref, a_ref, *,
                            h_pad, n_valid, n_pad):
    # One grid step == one bag; everything for a bag fits comfortably in VMEM.
    x = x_ref[0]                                                      # (Np, Dp) bf16

    # Fused V/U gate matmul on the MXU: bf16 operands, f32 accumulation.
    pre = (jnp.dot(x, w_ref[...], preferred_element_type=jnp.float32)
           + b_ref[...])                                              # (Np, 2Hp) f32

    # Lane-aligned static slices: V half = [0, Hp), U half = [Hp, 2Hp).
    av = jnp.tanh(pre[:, :h_pad])                                     # (Np, Hp)
    au = jax.nn.sigmoid(pre[:, h_pad:])                               # (Np, Hp)
    gated = av * au                                                   # (Np, Hp)

    # Lane-dense (1, Np) score row on the MXU (contract over the hidden dim).
    # (b_w is omitted: softmax is shift-invariant.)
    scores = lax.dot_general(ww_ref[...], gated, (((1,), (1,)), ((), ())),
                             preferred_element_type=jnp.float32)      # (1, Np)

    # Mask zero-padded instances so they do not contaminate the softmax.
    if n_valid < n_pad:
        lane = lax.broadcasted_iota(jnp.int32, scores.shape, 1)
        scores = jnp.where(lane < n_valid, scores, -1e30)

    # Softmax over the instance (lane) axis.
    m = jnp.max(scores, axis=-1, keepdims=True)
    e = jnp.exp(scores - m)
    p = e / jnp.sum(e, axis=-1, keepdims=True)                        # (1, Np) f32

    a_ref[0] = p
    # z = A @ x: contract over the instances on the MXU.
    z_ref[0] = jnp.dot(p.astype(x.dtype), x,
                       preferred_element_type=jnp.float32)            # (1, Dp)


def prepare_params(params):
    """One-time (outside jit) repack of the nn.Linear parameters:
      * fused, transposed, lane-aligned gate weight (Dp, 2*Hp) in bf16
        (W_V in columns [0, Hp), W_U in columns [Hp, 2*Hp), zero padded),
      * fused gate bias (1, 2*Hp) f32,
      * score weight row (1, Hp) f32.
    b_w is dropped (it cannot affect the softmax output)."""
    wv, bv, wu, bu, ww, _bw = params
    h, d = wv.shape
    hp = _round_up(h, 128)
    dp = _round_up(d, 128)
    w_cat = jnp.zeros((dp, 2 * hp), jnp.float32)
    w_cat = w_cat.at[:d, :h].set(wv.T).at[:d, hp:hp + h].set(wu.T)
    b_cat = jnp.zeros((1, 2 * hp), jnp.float32)
    b_cat = b_cat.at[0, :h].set(bv).at[0, hp:hp + h].set(bu)
    ww_row = jnp.zeros((1, hp), jnp.float32).at[0, :h].set(ww.reshape(-1))
    return w_cat.astype(jnp.bfloat16), b_cat, ww_row, hp


def gated_attention(x, w_cat, b_cat, ww_row, *, hidden_pad):
    """x: (N, D) or (B, N, D) float32 bag(s) of instance features.
    Returns (z, A) matching the torch module: (1, D) / (1, N) for a 2-D input,
    (B, 1, D) / (B, 1, N) for a batched input."""
    squeeze = x.ndim == 2
    if squeeze:
        x = x[None]
    bags, n, d = x.shape
    dp = w_cat.shape[0]
    hp = hidden_pad
    n_pad = _round_up(n, 128)

    # Zero-pad instances/features to lane-aligned shapes and cast the only
    # sizeable operand to bf16 (halves the HBM->VMEM DMA bytes).
    x_p = jnp.pad(x.astype(jnp.bfloat16), ((0, 0), (0, n_pad - n), (0, dp - d)))

    cost = pl.CostEstimate(
        flops=int(bags * (2 * n_pad * dp * 2 * hp + 2 * n_pad * hp
                          + 2 * n_pad * dp)),
        transcendentals=int(bags * (2 * n_pad * hp + n_pad)),
        bytes_accessed=int(bags * (2 * n_pad * dp + 4 * dp + 4 * n_pad)
                           + 2 * dp * 2 * hp + 4 * 2 * hp + 4 * hp),
    )

    kernel = functools.partial(_gated_attention_kernel,
                               h_pad=hp, n_valid=n, n_pad=n_pad)

    z_p, a_p = pl.pallas_call(
        kernel,
        grid=(bags,),
        in_specs=[
            pl.BlockSpec((1, n_pad, dp), lambda b: (b, 0, 0)),    # x (per-bag block)
            pl.BlockSpec((dp, 2 * hp), lambda b: (0, 0)),         # fused gate weight
            pl.BlockSpec((1, 2 * hp), lambda b: (0, 0)),          # fused gate bias
            pl.BlockSpec((1, hp), lambda b: (0, 0)),              # score weight row
        ],
        out_specs=(
            pl.BlockSpec((1, 1, dp), lambda b: (b, 0, 0)),        # z (lane-dense)
            pl.BlockSpec((1, 1, n_pad), lambda b: (b, 0, 0)),     # A (lane-dense)
        ),
        out_shape=(
            jax.ShapeDtypeStruct((bags, 1, dp), jnp.float32),
            jax.ShapeDtypeStruct((bags, 1, n_pad), jnp.float32),
        ),
        compiler_params=pltpu.CompilerParams(
            dimension_semantics=("parallel",)),
        cost_estimate=cost,
    )(x_p, w_cat, b_cat, ww_row)

    # Slice the zero padding back off outside the kernel (cheap, lane-contiguous).
    z = z_p[:, :, :d]
    A = a_p[:, :, :n]
    if squeeze:
        z, A = z[0], A[0]
    return z, A


def init_params(key, input_size, hidden_size):
    """Deterministic synthetic parameters with the nn.Linear shapes."""
    ks = jax.random.split(key, 6)
    sc_in = 1.0 / jnp.sqrt(input_size)
    sc_h = 1.0 / jnp.sqrt(hidden_size)
    wv = jax.random.uniform(ks[0], (hidden_size, input_size), jnp.float32, -sc_in, sc_in)
    bv = jax.random.uniform(ks[1], (hidden_size,), jnp.float32, -sc_in, sc_in)
    wu = jax.random.uniform(ks[2], (hidden_size, input_size), jnp.float32, -sc_in, sc_in)
    bu = jax.random.uniform(ks[3], (hidden_size,), jnp.float32, -sc_in, sc_in)
    ww = jax.random.uniform(ks[4], (1, hidden_size), jnp.float32, -sc_h, sc_h)
    bw = jax.random.uniform(ks[5], (1,), jnp.float32, -sc_h, sc_h)
    return wv, bv, wu, bu, ww, bw


def gated_attention_ref(x, params):
    """Pure-JAX f32 reference mirroring the torch forward."""
    wv, bv, wu, bu, ww, bw = params
    av = jnp.tanh(x @ wv.T + bv)
    au = jax.nn.sigmoid(x @ wu.T + bu)
    s = (av * au) @ ww.T + bw            # (N, 1)
    A = jax.nn.softmax(s.T, axis=1)      # (1, N)
    z = A @ x                            # (1, D)
    return z, A


def _run_case(key, bags, n, input_size, hidden_size):
    kx, kp = jax.random.split(key)
    if bags is None:
        x = jax.random.normal(kx, (n, input_size), jnp.float32)
    else:
        x = jax.random.normal(kx, (bags, n, input_size), jnp.float32)
    params = init_params(kp, input_size, hidden_size)

    # Repack weights once, eagerly (not per-call under jit).
    w_cat, b_cat, ww_row, hp = prepare_params(params)

    fn = jax.jit(functools.partial(gated_attention, hidden_pad=hp))
    z, A = fn(x, w_cat, b_cat, ww_row)
    jax.block_until_ready((z, A))

    # bf16 MXU inputs => tolerances looser than the pure-f32 reference.
    atol_z, rtol_z = 1e-2, 2e-2
    atol_a, rtol_a = 1e-3, 2e-2
    if bags is None:
        assert z.shape == (1, input_size) and A.shape == (1, n)
        z_ref, A_ref = gated_attention_ref(x, params)
        assert jnp.allclose(z, z_ref, atol=atol_z, rtol=rtol_z)
        assert jnp.allclose(A, A_ref, atol=atol_a, rtol=rtol_a)
    else:
        assert z.shape == (bags, 1, input_size) and A.shape == (bags, 1, n)
        for b in range(bags):
            z_ref, A_ref = gated_attention_ref(x[b], params)
            assert jnp.allclose(z[b], z_ref, atol=atol_z, rtol=rtol_z)
            assert jnp.allclose(A[b], A_ref, atol=atol_a, rtol=rtol_a)


if __name__ == "__main__":
    key = jax.random.PRNGKey(0)
    k1, k2 = jax.random.split(key)

    # GatedAttention(49, 49) applied to the (N, 49) flattened ResNet feature
    # map (the ResNet-internal configuration), single-bag 2-D path.
    _run_case(k1, bags=None, n=256, input_size=49, hidden_size=49)

    # GatedAttention(512, 256)-style head (the ResnetABMIL configuration),
    # two bags batched over the parallel grid axis, small instance count.
    _run_case(k2, bags=2, n=64, input_size=512, hidden_size=256)

    print("KERNEL_OK")
</pallas_src>

<mosaic_0001>
module attributes {stable_mosaic.version = 11 : i64} {
  func.func @_gated_attention_kernel(%arg0: i32, %arg1: memref<1x256x128xbf16, #tpu.memory_space<vmem>>, %arg2: memref<128x256xbf16, #tpu.memory_space<vmem>>, %arg3: memref<1x256xf32, #tpu.memory_space<vmem>>, %arg4: memref<1x128xf32, #tpu.memory_space<vmem>>, %arg5: memref<1x1x128xf32, #tpu.memory_space<vmem>>, %arg6: memref<1x1x256xf32, #tpu.memory_space<vmem>>) attributes {dimension_semantics = [#tpu.dimension_semantics<parallel>], iteration_bounds = array<i64: 1>, scalar_prefetch = 0 : i64, scratch_operands = 0 : i64, tpu.core_type = #tpu.core_type<tc>, window_params = [{transform_indices = @transform_0, window_bounds = array<i64: 1, 256, 128>}, {pipeline_mode = #tpu.pipeline_mode<synchronous>, transform_indices = @transform_1, window_bounds = array<i64: 128, 256>}, {pipeline_mode = #tpu.pipeline_mode<synchronous>, transform_indices = @transform_2, window_bounds = array<i64: 1, 256>}, {pipeline_mode = #tpu.pipeline_mode<synchronous>, transform_indices = @transform_3, window_bounds = array<i64: 1, 128>}, {transform_indices = @transform_4, window_bounds = array<i64: 1, 1, 128>}, {transform_indices = @transform_5, window_bounds = array<i64: 1, 1, 256>}]} {
    %c0 = arith.constant 0 : index
    %c0_0 = arith.constant 0 : index
    %c0_1 = arith.constant 0 : index
    %0 = vector.load %arg1[%c0, %c0_0, %c0_1] : memref<1x256x128xbf16, #tpu.memory_space<vmem>>, vector<1x256x128xbf16>
    %1 = vector.shape_cast %0 : vector<1x256x128xbf16> to vector<256x128xbf16>
    %c0_2 = arith.constant 0 : index
    %c0_3 = arith.constant 0 : index
    %2 = vector.load %arg2[%c0_2, %c0_3] : memref<128x256xbf16, #tpu.memory_space<vmem>>, vector<128x256xbf16>
    %cst = arith.constant dense<0.000000e+00> : vector<256x256xf32>
    %3 = tpu.matmul %1, %2, %cst {dimension_numbers = #tpu.dot_dimension_numbers<[1], [0], [0], [1], [0, 0, 1, 1], [], []>} : vector<256x128xbf16>, vector<128x256xbf16>, vector<256x256xf32> -> vector<256x256xf32>
    %c0_4 = arith.constant 0 : index
    %c0_5 = arith.constant 0 : index
    %4 = vector.load %arg3[%c0_4, %c0_5] : memref<1x256xf32, #tpu.memory_space<vmem>>, vector<1x256xf32>
    %5 = vector.broadcast %4 : vector<1x256xf32> to vector<256x256xf32>
    %6 = arith.addf %3, %5 : vector<256x256xf32>
    %7 = vector.extract_strided_slice %6 {offsets = [0, 0], sizes = [256, 128], strides = [1, 1]} : vector<256x256xf32> to vector<256x128xf32>
    %8 = math.tanh %7 : vector<256x128xf32>
    %9 = vector.extract_strided_slice %6 {offsets = [0, 128], sizes = [256, 128], strides = [1, 1]} : vector<256x256xf32> to vector<256x128xf32>
    %10 = arith.negf %9 : vector<256x128xf32>
    %11 = math.exp %10 : vector<256x128xf32>
    %cst_6 = arith.constant 1.000000e+00 : f32
    %12 = vector.broadcast %cst_6 : f32 to vector<256x128xf32>
    %13 = arith.addf %12, %11 : vector<256x128xf32>
    %14 = arith.divf %12, %13 : vector<256x128xf32>
    %15 = arith.mulf %8, %14 : vector<256x128xf32>
    %c0_7 = arith.constant 0 : index
    %c0_8 = arith.constant 0 : index
    %16 = vector.load %arg4[%c0_7, %c0_8] : memref<1x128xf32, #tpu.memory_space<vmem>>, vector<1x128xf32>
    %cst_9 = arith.constant dense<0.000000e+00> : vector<1x256xf32>
    %17 = tpu.matmul %16, %15, %cst_9 {dimension_numbers = #tpu.dot_dimension_numbers<[1], [1], [0], [0], [0, 0, 1, 0], [], []>} : vector<1x128xf32>, vector<256x128xf32>, vector<1x256xf32> -> vector<1x256xf32>
    %cst_10 = arith.constant dense<0xFF800000> : vector<1xf32>
    %18 = vector.multi_reduction <maximumf>, %17, %cst_10 [1] : vector<1x256xf32> to vector<1xf32>
    %19 = vector.shape_cast %18 : vector<1xf32> to vector<1x1xf32>
    %20 = vector.broadcast %19 : vector<1x1xf32> to vector<1x256xf32>
    %21 = arith.subf %17, %20 : vector<1x256xf32>
    %22 = math.exp %21 : vector<1x256xf32>
    %cst_11 = arith.constant dense<0.000000e+00> : vector<1xf32>
    %23 = vector.multi_reduction <add>, %22, %cst_11 [1] : vector<1x256xf32> to vector<1xf32>
    %24 = vector.shape_cast %23 : vector<1xf32> to vector<1x1xf32>
    %25 = vector.broadcast %24 : vector<1x1xf32> to vector<1x256xf32>
    %26 = arith.divf %22, %25 : vector<1x256xf32>
    %c0_12 = arith.constant 0 : index
    %c0_13 = arith.constant 0 : index
    %c0_14 = arith.constant 0 : index
    %27 = vector.load %arg6[%c0_12, %c0_13, %c0_14] : memref<1x1x256xf32, #tpu.memory_space<vmem>>, vector<1x1x256xf32>
    %28 = vector.shape_cast %27 : vector<1x1x256xf32> to vector<1x256xf32>
    %29 = vector.shape_cast %26 : vector<1x256xf32> to vector<1x1x256xf32>
    tpu.vector_store %arg6[%c0_12, %c0_13, %c0_14], %29 {strides = array<i32>} : memref<1x1x256xf32, #tpu.memory_space<vmem>>, vector<1x1x256xf32>,
    %30 = arith.truncf %26 : vector<1x256xf32> to vector<1x256xbf16>
    %cst_15 = arith.constant dense<0.000000e+00> : vector<1x128xf32>
    %31 = tpu.matmul %30, %1, %cst_15 {dimension_numbers = #tpu.dot_dimension_numbers<[1], [0], [0], [1], [0, 0, 1, 1], [], []>} : vector<1x256xbf16>, vector<256x128xbf16>, vector<1x128xf32> -> vector<1x128xf32>
    %c0_16 = arith.constant 0 : index
    %c0_17 = arith.constant 0 : index
    %c0_18 = arith.constant 0 : index
    %32 = vector.load %arg5[%c0_16, %c0_17, %c0_18] : memref<1x1x128xf32, #tpu.memory_space<vmem>>, vector<1x1x128xf32>
    %33 = vector.shape_cast %32 : vector<1x1x128xf32> to vector<1x128xf32>
    %34 = vector.shape_cast %31 : vector<1x128xf32> to vector<1x1x128xf32>
    tpu.vector_store %arg5[%c0_16, %c0_17, %c0_18], %34 {strides = array<i32>} : memref<1x1x128xf32, #tpu.memory_space<vmem>>, vector<1x1x128xf32>,
    return
  }
  func.func @transform_0(%arg0: i32) -> (i32, i32, i32) {
    %c0_i32 = arith.constant 0 : i32
    %c0_i32_0 = arith.constant 0 : i32
    %c0_i32_1 = arith.constant 0 : i32
    return %arg0, %c0_i32, %c0_i32_0 : i32, i32, i32
  }
  func.func @transform_1(%arg0: i32) -> (i32, i32) {
    %c0_i32 = arith.constant 0 : i32
    %c0_i32_0 = arith.constant 0 : i32
    %c0_i32_1 = arith.constant 0 : i32
    return %c0_i32, %c0_i32_0 : i32, i32
  }
  func.func @transform_2(%arg0: i32) -> (i32, i32) {
    %c0_i32 = arith.constant 0 : i32
    %c0_i32_0 = arith.constant 0 : i32
    %c0_i32_1 = arith.constant 0 : i32
    return %c0_i32, %c0_i32_0 : i32, i32
  }
  func.func @transform_3(%arg0: i32) -> (i32, i32) {
    %c0_i32 = arith.constant 0 : i32
    %c0_i32_0 = arith.constant 0 : i32
    %c0_i32_1 = arith.constant 0 : i32
    return %c0_i32, %c0_i32_0 : i32, i32
  }
  func.func @transform_4(%arg0: i32) -> (i32, i32, i32) {
    %c0_i32 = arith.constant 0 : i32
    %c0_i32_0 = arith.constant 0 : i32
    %c0_i32_1 = arith.constant 0 : i32
    return %arg0, %c0_i32, %c0_i32_0 : i32, i32, i32
  }
  func.func @transform_5(%arg0: i32) -> (i32, i32, i32) {
    %c0_i32 = arith.constant 0 : i32
    %c0_i32_0 = arith.constant 0 : i32
    %c0_i32_1 = arith.constant 0 : i32
    return %arg0, %c0_i32, %c0_i32_0 : i32, i32, i32
  }
}

</mosaic_0001>

<llo_original>
// kernel: gated_attention.1
$region0: #{gated_attention.1}
  #allocation0 [shape = 'u32[]', space=smem, size = 0x4, offset = 0x4, fixed_abs, tag = 'smem constant byte address 0x4 - core index']
  #allocation1 [shape = 'u32[144,128]{1,0:T(1,128)}', space=vmem, size = 0x12000, scoped, tag = 'internal scratch']
  %s0 = inlined_call_operand.vmem [shape: bf16[1,256,128], index: 0, kind: input, shape index: {}]
  %s1 = inlined_call_operand.vmem [shape: bf16[128,256], index: 1, kind: input, shape index: {}]
  %s2 = inlined_call_operand.vmem [shape: f32[1,256], index: 2, kind: input, shape index: {}]
  %s3 = inlined_call_operand.vmem [shape: f32[1,128], index: 3, kind: input, shape index: {}]
  %s4 = inlined_call_operand.vmem [shape: f32[1,1,128], index: 4, kind: output, shape index: {0}]
  %s5 = inlined_call_operand.hbm [shape: f32[1,1,256], index: 5, kind: output, shape index: {1}]
  %6 = xla_tuple %s4, %s5
  %s7 = sld [smem:[#allocation0]]
  $region34: #{gated_attention.1} parent=0
    _
  %s9 = ssub.s32 1, %s7
  %s10 = scalar_select 0, %s9, %s7
  $region1: #{gated_attention.1} parent=0
    #allocation2 [shape = 'u8[1024]{0}', space=vmem, size = 0x400, scoped, tag = 'output window, operand 1, single buffered']
    #allocation3 [shape = 's32[1]{0}', space=sflag, size = 0x4, scoped, tag = 'scoped memory for gated_attention.1']
    %11 = vsyncpa [#allocation3], 0
    // Predicated region
    $region2: #{gated_attention.1} parent=1 // pred_check
      _
    $region3: #{gated_attention.1} parent=1 // pred_check_branch
      %13 = sbr.rel (0) target = $region5
    $region4: #{gated_attention.1} parent=1 // pred_region
      _
    $region5: #{gated_attention.1} parent=1 // pred_fallthru
      _
    // Predicated region
    $region6: #{gated_attention.1} parent=1 // pred_check
      _
    $region7: #{gated_attention.1} parent=1 // pred_check_branch
      %15 = sbr.rel (0) target = $region9
    $region8: #{gated_attention.1} parent=1 // pred_region
      _
    $region9: #{gated_attention.1} parent=1 // pred_fallthru
      _
    // Predicated region
    $region10: #{gated_attention.1} parent=1 // pred_check
      _
    $region11: #{gated_attention.1} parent=1 // pred_check_branch
      %17 = sbr.rel (0) target = $region13
    $region12: #{gated_attention.1} parent=1 // pred_region
      _
    $region13: #{gated_attention.1} parent=1 // pred_fallthru
      _
    // Predicated region
    $region14: #{gated_attention.1} parent=1 // pred_check
      _
    $region15: #{gated_attention.1} parent=1 // pred_check_branch
      %19 = sbr.rel (0) target = $region17
    $region16: #{gated_attention.1} parent=1 // pred_region
      _
    $region17: #{gated_attention.1} parent=1 // pred_fallthru
      _
    %v21 = vld [vmem:[%s0] sm:$0xf]
    %v22 = vld [vmem:[%s0 + $0x4] sm:$0xf]
    %v23 = vld [vmem:[%s0 + $0x8] sm:$0xf]
    %v24 = vld [vmem:[%s0 + $0xc] sm:$0xf]
    %v25 = vld [vmem:[%s0 + $0x10] sm:$0xf]
    %v26 = vld [vmem:[%s0 + $0x14] sm:$0xf]
    %v27 = vld [vmem:[%s0 + $0x18] sm:$0xf]
    %v28 = vld [vmem:[%s0 + $0x1c] sm:$0xf]
    %v29 = vld [vmem:[%s0 + $0x20] sm:$0xf]
    %v30 = vld [vmem:[%s0 + $0x24] sm:$0xf]
    %v31 = vld [vmem:[%s0 + $0x28] sm:$0xf]
    %v32 = vld [vmem:[%s0 + $0x2c] sm:$0xf]
    %v33 = vld [vmem:[%s0 + $0x30] sm:$0xf]
    %v34 = vld [vmem:[%s0 + $0x34] sm:$0xf]
    %v35 = vld [vmem:[%s0 + $0x38] sm:$0xf]
    %v36 = vld [vmem:[%s0 + $0x3c] sm:$0xf]
    %v37 = vld [vmem:[%s0 + $0x40] sm:$0xf]
    %v38 = vld [vmem:[%s0 + $0x44] sm:$0xf]
    %v39 = vld [vmem:[%s0 + $0x48] sm:$0xf]
    %v40 = vld [vmem:[%s0 + $0x4c] sm:$0xf]
    %v41 = vld [vmem:[%s0 + $0x50] sm:$0xf]
    %v42 = vld [vmem:[%s0 + $0x54] sm:$0xf]
    %v43 = vld [vmem:[%s0 + $0x58] sm:$0xf]
    %v44 = vld [vmem:[%s0 + $0x5c] sm:$0xf]
    %v45 = vld [vmem:[%s0 + $0x60] sm:$0xf]
    %v46 = vld [vmem:[%s0 + $0x64] sm:$0xf]
    %v47 = vld [vmem:[%s0 + $0x68] sm:$0xf]
    %v48 = vld [vmem:[%s0 + $0x6c] sm:$0xf]
    %v49 = vld [vmem:[%s0 + $0x70] sm:$0xf]
    %v50 = vld [vmem:[%s0 + $0x74] sm:$0xf]
    %v51 = vld [vmem:[%s0 + $0x78] sm:$0xf]
    %v52 = vld [vmem:[%s0 + $0x7c] sm:$0xf]
    %v53 = vld [vmem:[%s1] sm:$0xff]
    %v54 = vld [vmem:[%s1 + $0x8] sm:$0xff]
    %v55 = vld [vmem:[%s1 + $0x10] sm:$0xff]
    %v56 = vld [vmem:[%s1 + $0x18] sm:$0xff]
    %v57 = vld [vmem:[%s1 + $0x20] sm:$0xff]
    %v58 = vld [vmem:[%s1 + $0x28] sm:$0xff]
    %v59 = vld [vmem:[%s1 + $0x30] sm:$0xff]
    %v60 = vld [vmem:[%s1 + $0x38] sm:$0xff]
    %v61 = vld [vmem:[%s1 + $0x40] sm:$0xff]
    %v62 = vld [vmem:[%s1 + $0x48] sm:$0xff]
    %v63 = vld [vmem:[%s1 + $0x50] sm:$0xff]
    %v64 = vld [vmem:[%s1 + $0x58] sm:$0xff]
    %v65 = vld [vmem:[%s1 + $0x60] sm:$0xff]
    %v66 = vld [vmem:[%s1 + $0x68] sm:$0xff]
    %v67 = vld [vmem:[%s1 + $0x70] sm:$0xff]
    %v68 = vld [vmem:[%s1 + $0x78] sm:$0xff]
    %v69 = vld [vmem:[%s2] sm:$0x3]
    %v71 = vlaneseq
    %v72 = vshrl.u32 %v71, 7
    %v73 = vsub.s32 0, %v72
    %v74 = vrot.slane %v69, %v73
    %v75 = vlaneseq
    %v76 = vshrl.u32 %v75, 7
    %v77 = vsub.s32 1, %v76
    %v78 = vrot.slane %v69, %v77
    %v113 = vunpack.c.l.b16 %v21
    %v114 = vunpack.c.l.b16 %v22
    %v115 = vunpack.c.l.b16 %v23
    %v116 = vunpack.c.l.b16 %v24
    %v117 = vunpack.c.l.b16 %v25
    %v118 = vunpack.c.l.b16 %v26
    %v119 = vunpack.c.l.b16 %v27
    %v120 = vunpack.c.l.b16 %v28
    %v121 = vunpack.c.l.b16 %v29
    %v122 = vunpack.c.l.b16 %v30
    %v123 = vunpack.c.l.b16 %v31
    %v124 = vunpack.c.l.b16 %v32
    %v125 = vunpack.c.l.b16 %v33
    %v126 = vunpack.c.l.b16 %v34
    %v127 = vunpack.c.l.b16 %v35
    %v128 = vunpack.c.l.b16 %v36
    %v129 = vunpack.c.l.b16 %v37
    %v130 = vunpack.c.l.b16 %v38
    %v131 = vunpack.c.l.b16 %v39
    %v132 = vunpack.c.l.b16 %v40
    %v133 = vunpack.c.l.b16 %v41
    %v134 = vunpack.c.l.b16 %v42
    %v135 = vunpack.c.l.b16 %v43
    %v136 = vunpack.c.l.b16 %v44
    %v137 = vunpack.c.l.b16 %v45
    %v138 = vunpack.c.l.b16 %v46
    %v139 = vunpack.c.l.b16 %v47
    %v140 = vunpack.c.l.b16 %v48
    %v141 = vunpack.c.l.b16 %v49
    %v142 = vunpack.c.l.b16 %v50
    %v143 = vunpack.c.l.b16 %v51
    %v144 = vunpack.c.l.b16 %v52
    %v145 = vpack.c.b16 %v114, %v113
    %v146 = vpack.c.b16 %v116, %v115
    %v147 = vpack.c.b16 %v118, %v117
    %v148 = vpack.c.b16 %v120, %v119
    %v149 = vpack.c.b16 %v122, %v121
    %v150 = vpack.c.b16 %v124, %v123
    %v151 = vpack.c.b16 %v126, %v125
    %v152 = vpack.c.b16 %v128, %v127
    %v153 = vpack.c.b16 %v130, %v129
    %v154 = vpack.c.b16 %v132, %v131
    %v155 = vpack.c.b16 %v134, %v133
    %v156 = vpack.c.b16 %v136, %v135
    %v157 = vpack.c.b16 %v138, %v137
    %v158 = vpack.c.b16 %v140, %v139
    %v159 = vpack.c.b16 %v142, %v141
    %v160 = vpack.c.b16 %v144, %v143
    %v193 = vunpack.c.l.b16 %v53
    %v194 = vunpack.c.h.b16 %v53
    %v195 = vunpack.c.l.b16 %v54
    %v196 = vunpack.c.h.b16 %v54
    %v197 = vunpack.c.l.b16 %v55
    %v198 = vunpack.c.h.b16 %v55
    %v199 = vunpack.c.l.b16 %v56
    %v200 = vunpack.c.h.b16 %v56
    %v201 = vunpack.c.l.b16 %v57
    %v202 = vunpack.c.h.b16 %v57
    %v203 = vunpack.c.l.b16 %v58
    %v204 = vunpack.c.h.b16 %v58
    %v205 = vunpack.c.l.b16 %v59
    %v206 = vunpack.c.h.b16 %v59
    %v207 = vunpack.c.l.b16 %v60
    %v208 = vunpack.c.h.b16 %v60
    %v209 = vunpack.c.l.b16 %v61
    %v210 = vunpack.c.h.b16 %v61
    %v211 = vunpack.c.l.b16 %v62
    %v212 = vunpack.c.h.b16 %v62
    %v213 = vunpack.c.l.b16 %v63
    %v214 = vunpack.c.h.b16 %v63
    %v215 = vunpack.c.l.b16 %v64
    %v216 = vunpack.c.h.b16 %v64
    %v217 = vunpack.c.l.b16 %v65
    %v218 = vunpack.c.h.b16 %v65
    %v219 = vunpack.c.l.b16 %v66
    %v220 = vunpack.c.h.b16 %v66
    %v221 = vunpack.c.l.b16 %v67
    %v222 = vunpack.c.h.b16 %v67
    %v223 = vunpack.c.l.b16 %v68
    %v224 = vunpack.c.h.b16 %v68
    %v225 = vpack.c.b16 %v195, %v193
    %v226 = vpack.c.b16 %v196, %v194
    %v227 = vpack.c.b16 %v199, %v197
    %v228 = vpack.c.b16 %v200, %v198
    %v229 = vpack.c.b16 %v203, %v201
    %v230 = vpack.c.b16 %v204, %v202
    %v231 = vpack.c.b16 %v207, %v205
    %v232 = vpack.c.b16 %v208, %v206
    %v233 = vpack.c.b16 %v211, %v209
    %v234 = vpack.c.b16 %v212, %v210
    %v235 = vpack.c.b16 %v215, %v213
    %v236 = vpack.c.b16 %v216, %v214
    %v237 = vpack.c.b16 %v219, %v217
    %v238 = vpack.c.b16 %v220, %v218
    %v239 = vpack.c.b16 %v223, %v221
    %v240 = vpack.c.b16 %v224, %v222
    %257 = vmatprep.subr.bf16.mxu0 %v240
    %258 = vmatpush1.bf16.msra.mxu0 %v239
    %259 = vmatprep.subr.bf16.mxu0 %v238
    %260 = vmatpush1.bf16.msra.mxu0 %v237
    %261 = vmatprep.subr.bf16.mxu0 %v236
    %262 = vmatpush1.bf16.msra.mxu0 %v235
    %263 = vmatprep.subr.bf16.mxu0 %v234
    %264 = vmatpush1.bf16.msra.mxu0 %v233
    %265 = vmatprep.subr.bf16.mxu0 %v232
    %266 = vmatpush1.bf16.msra.mxu0 %v231
    %267 = vmatprep.subr.bf16.mxu0 %v230
    %268 = vmatpush1.bf16.msra.mxu0 %v229
    %269 = vmatprep.subr.bf16.mxu0 %v228
    %270 = vmatpush1.bf16.msra.mxu0 %v227
    %271 = vmatprep.subr.bf16.mxu0 %v226
    %272 = vmatpush1.bf16.msra.mxu0 %v225
    %273 = vmatprep.subr.bf16.mxu0 0
    %274 = vmatpush2.bf16.msra.mxu0 0
    %275 = vmatprep.subr.bf16.mxu0 0
    %276 = vmatpush2.bf16.msra.mxu0 0
    %277 = vmatprep.subr.bf16.mxu0 0
    %278 = vmatpush2.bf16.msra.mxu0 0
    %279 = vmatprep.subr.bf16.mxu0 0
    %280 = vmatpush2.bf16.msra.mxu0 0
    %281 = vmatprep.subr.bf16.mxu0 0
    %282 = vmatpush2.bf16.msra.mxu0 0
    %283 = vmatprep.subr.bf16.mxu0 0
    %284 = vmatpush2.bf16.msra.mxu0 0
    %285 = vmatprep.subr.bf16.mxu0 0
    %286 = vmatpush2.bf16.msra.mxu0 0
    %287 = vmatprep.subr.bf16.mxu0 0
    %288 = vmatpush2.bf16.msra.mxu0 0
    %289 = vmatprep.mubr.bf16.mxu0 0
    %290 = vmatmul.mubr.bf16.gmra.mxu0 %v145
    %v291 = vpop.f32.mrf.mxu0
    %v292 = vadd.f32 %v74, %v291
    %v293 = vpop.f32.mrf.mxu0
    %v294 = vadd.f32 %v78, %v293
    %v295 = vpop.f32.mrf.mxu0
    %v296 = vadd.f32 %v74, %v295
    %v297 = vpop.f32.mrf.mxu0
    %v298 = vadd.f32 %v78, %v297
    %299 = vmatprep.mubr.bf16.mxu0 0
    %300 = vmatmul.mubr.bf16.gmra.mxu0 %v146
    %v301 = vpop.f32.mrf.mxu0
    %v302 = vadd.f32 %v74, %v301
    %v303 = vpop.f32.mrf.mxu0
    %v304 = vadd.f32 %v78, %v303
    %v305 = vpop.f32.mrf.mxu0
    %v306 = vadd.f32 %v74, %v305
    %v307 = vpop.f32.mrf.mxu0
    %v308 = vadd.f32 %v78, %v307
    %309 = vmatprep.mubr.bf16.mxu0 0
    %310 = vmatmul.mubr.bf16.gmra.mxu0 %v147
    %v311 = vpop.f32.mrf.mxu0
    %v312 = vadd.f32 %v74, %v311
    %v313 = vpop.f32.mrf.mxu0
    %v314 = vadd.f32 %v78, %v313
    %v315 = vpop.f32.mrf.mxu0
    %v316 = vadd.f32 %v74, %v315
    %v317 = vpop.f32.mrf.mxu0
    %v318 = vadd.f32 %v78, %v317
    %319 = vmatprep.mubr.bf16.mxu0 0
    %320 = vmatmul.mubr.bf16.gmra.mxu0 %v148
    %v321 = vpop.f32.mrf.mxu0
    %v322 = vadd.f32 %v74, %v321
    %v323 = vpop.f32.mrf.mxu0
    %v324 = vadd.f32 %v78, %v323
    %v325 = vpop.f32.mrf.mxu0
    %v326 = vadd.f32 %v74, %v325
    %v327 = vpop.f32.mrf.mxu0
    %v328 = vadd.f32 %v78, %v327
    %329 = vmatprep.mubr.bf16.mxu0 0
    %330 = vmatmul.mubr.bf16.gmra.mxu0 %v149
    %v331 = vpop.f32.mrf.mxu0
    %v332 = vadd.f32 %v74, %v331
    %v333 = vpop.f32.mrf.mxu0
    %v334 = vadd.f32 %v78, %v333
    %v335 = vpop.f32.mrf.mxu0
    %v336 = vadd.f32 %v74, %v335
    %v337 = vpop.f32.mrf.mxu0
    %v338 = vadd.f32 %v78, %v337
    %339 = vmatprep.mubr.bf16.mxu0 0
    %340 = vmatmul.mubr.bf16.gmra.mxu0 %v150
    %v341 = vpop.f32.mrf.mxu0
    %v342 = vadd.f32 %v74, %v341
    %v343 = vpop.f32.mrf.mxu0
    %v344 = vadd.f32 %v78, %v343
    %v345 = vpop.f32.mrf.mxu0
    %v346 = vadd.f32 %v74, %v345
    %v347 = vpop.f32.mrf.mxu0
    %v348 = vadd.f32 %v78, %v347
    %349 = vmatprep.mubr.bf16.mxu0 0
    %350 = vmatmul.mubr.bf16.gmra.mxu0 %v151
    %v351 = vpop.f32.mrf.mxu0
    %v352 = vadd.f32 %v74, %v351
    %v353 = vpop.f32.mrf.mxu0
    %v354 = vadd.f32 %v78, %v353
    %v355 = vpop.f32.mrf.mxu0
    %v356 = vadd.f32 %v74, %v355
    %v357 = vpop.f32.mrf.mxu0
    %v358 = vadd.f32 %v78, %v357
    %359 = vmatprep.mubr.bf16.mxu0 0
    %360 = vmatmul.mubr.bf16.gmra.mxu0 %v152
    %v361 = vpop.f32.mrf.mxu0
    %v362 = vadd.f32 %v74, %v361
    %v363 = vpop.f32.mrf.mxu0
    %v364 = vadd.f32 %v78, %v363
    %v365 = vpop.f32.mrf.mxu0
    %v366 = vadd.f32 %v74, %v365
    %v367 = vpop.f32.mrf.mxu0
    %v368 = vadd.f32 %v78, %v367
    %369 = vmatprep.mubr.bf16.mxu0 0
    %370 = vmatmul.mubr.bf16.gmra.mxu0 %v153
    %v371 = vpop.f32.mrf.mxu0
    %v372 = vadd.f32 %v74, %v371
    %v373 = vpop.f32.mrf.mxu0
    %v374 = vadd.f32 %v78, %v373
    %v375 = vpop.f32.mrf.mxu0
    %v376 = vadd.f32 %v74, %v375
    %v377 = vpop.f32.mrf.mxu0
    %v378 = vadd.f32 %v78, %v377
    %379 = vmatprep.mubr.bf16.mxu0 0
    %380 = vmatmul.mubr.bf16.gmra.mxu0 %v154
    %v381 = vpop.f32.mrf.mxu0
    %v382 = vadd.f32 %v74, %v381
    %v383 = vpop.f32.mrf.mxu0
    %v384 = vadd.f32 %v78, %v383
    %v385 = vpop.f32.mrf.mxu0
    %v386 = vadd.f32 %v74, %v385
    %v387 = vpop.f32.mrf.mxu0
    %v388 = vadd.f32 %v78, %v387
    %389 = vmatprep.mubr.bf16.mxu0 0
    %390 = vmatmul.mubr.bf16.gmra.mxu0 %v155
    %v391 = vpop.f32.mrf.mxu0
    %v392 = vadd.f32 %v74, %v391
    %v393 = vpop.f32.mrf.mxu0
    %v394 = vadd.f32 %v78, %v393
    %v395 = vpop.f32.mrf.mxu0
    %v396 = vadd.f32 %v74, %v395
    %v397 = vpop.f32.mrf.mxu0
    %v398 = vadd.f32 %v78, %v397
    %399 = vmatprep.mubr.bf16.mxu0 0
    %400 = vmatmul.mubr.bf16.gmra.mxu0 %v156
    %v401 = vpop.f32.mrf.mxu0
    %v402 = vadd.f32 %v74, %v401
    %v403 = vpop.f32.mrf.mxu0
    %v404 = vadd.f32 %v78, %v403
    %v405 = vpop.f32.mrf.mxu0
    %v406 = vadd.f32 %v74, %v405
    %v407 = vpop.f32.mrf.mxu0
    %v408 = vadd.f32 %v78, %v407
    %409 = vmatprep.mubr.bf16.mxu0 0
    %410 = vmatmul.mubr.bf16.gmra.mxu0 %v157
    %v411 = vpop.f32.mrf.mxu0
    %v412 = vadd.f32 %v74, %v411
    %v413 = vpop.f32.mrf.mxu0
    %v414 = vadd.f32 %v78, %v413
    %v415 = vpop.f32.mrf.mxu0
    %v416 = vadd.f32 %v74, %v415
    %v417 = vpop.f32.mrf.mxu0
    %v418 = vadd.f32 %v78, %v417
    %419 = vmatprep.mubr.bf16.mxu0 0
    %420 = vmatmul.mubr.bf16.gmra.mxu0 %v158
    %v421 = vpop.f32.mrf.mxu0
    %v422 = vadd.f32 %v74, %v421
    %v423 = vpop.f32.mrf.mxu0
    %v424 = vadd.f32 %v78, %v423
    %v425 = vpop.f32.mrf.mxu0
    %v426 = vadd.f32 %v74, %v425
    %v427 = vpop.f32.mrf.mxu0
    %v428 = vadd.f32 %v78, %v427
    %429 = vmatprep.mubr.bf16.mxu0 0
    %430 = vmatmul.mubr.bf16.gmra.mxu0 %v159
    %v431 = vpop.f32.mrf.mxu0
    %v432 = vadd.f32 %v74, %v431
    %v433 = vpop.f32.mrf.mxu0
    %v434 = vadd.f32 %v78, %v433
    %v435 = vpop.f32.mrf.mxu0
    %v436 = vadd.f32 %v74, %v435
    %v437 = vpop.f32.mrf.mxu0
    %v438 = vadd.f32 %v78, %v437
    %439 = vmatprep.mubr.bf16.mxu0 0
    %440 = vmatmul.mubr.bf16.gmra.mxu0 %v160
    %v441 = vpop.f32.mrf.mxu0
    %v442 = vadd.f32 %v74, %v441
    %v443 = vpop.f32.mrf.mxu0
    %v444 = vadd.f32 %v78, %v443
    %v445 = vpop.f32.mrf.mxu0
    %v446 = vadd.f32 %v74, %v445
    %v447 = vpop.f32.mrf.mxu0
    %v448 = vadd.f32 %v78, %v447
    %449 = vdwg.mxu0
    %v450 = vtanh.pop %v292
    %v451 = vtanh.pop %v296
    %v452 = vtanh.pop %v302
    %v453 = vtanh.pop %v306
    %v454 = vtanh.pop %v312
    %v455 = vtanh.pop %v316
    %v456 = vtanh.pop %v322
    %v457 = vtanh.pop %v326
    %v458 = vtanh.pop %v332
    %v459 = vtanh.pop %v336
    %v460 = vtanh.pop %v342
    %v461 = vtanh.pop %v346
    %v462 = vtanh.pop %v352
    %v463 = vtanh.pop %v356
    %v464 = vtanh.pop %v362
    %v465 = vtanh.pop %v366
    %v466 = vtanh.pop %v372
    %v467 = vtanh.pop %v376
    %v468 = vtanh.pop %v382
    %v469 = vtanh.pop %v386
    %v470 = vtanh.pop %v392
    %v471 = vtanh.pop %v396
    %v472 = vtanh.pop %v402
    %v473 = vtanh.pop %v406
    %v474 = vtanh.pop %v412
    %v475 = vtanh.pop %v416
    %v476 = vtanh.pop %v422
    %v477 = vtanh.pop %v426
    %v478 = vtanh.pop %v432
    %v479 = vtanh.pop %v436
    %v480 = vtanh.pop %v442
    %v481 = vtanh.pop %v446
    %v482 = vxor.u32 %v294, 2147483648
    %v483 = vxor.u32 %v298, 2147483648
    %v484 = vxor.u32 %v304, 2147483648
    %v485 = vxor.u32 %v308, 2147483648
    %v486 = vxor.u32 %v314, 2147483648
    %v487 = vxor.u32 %v318, 2147483648
    %v488 = vxor.u32 %v324, 2147483648
    %v489 = vxor.u32 %v328, 2147483648
    %v490 = vxor.u32 %v334, 2147483648
    %v491 = vxor.u32 %v338, 2147483648
    %v492 = vxor.u32 %v344, 2147483648
    %v493 = vxor.u32 %v348, 2147483648
    %v494 = vxor.u32 %v354, 2147483648
    %v495 = vxor.u32 %v358, 2147483648
    %v496 = vxor.u32 %v364, 2147483648
    %v497 = vxor.u32 %v368, 2147483648
    %v498 = vxor.u32 %v374, 2147483648
    %v499 = vxor.u32 %v378, 2147483648
    %v500 = vxor.u32 %v384, 2147483648
    %v501 = vxor.u32 %v388, 2147483648
    %v502 = vxor.u32 %v394, 2147483648
    %v503 = vxor.u32 %v398, 2147483648
    %v504 = vxor.u32 %v404, 2147483648
    %v505 = vxor.u32 %v408, 2147483648
    %v506 = vxor.u32 %v414, 2147483648
    %v507 = vxor.u32 %v418, 2147483648
    %v508 = vxor.u32 %v424, 2147483648
    %v509 = vxor.u32 %v428, 2147483648
    %v510 = vxor.u32 %v434, 2147483648
    %v511 = vxor.u32 %v438, 2147483648
    %v512 = vxor.u32 %v444, 2147483648
    %v513 = vxor.u32 %v448, 2147483648
    %v514 = vmul.f32 %v482, 1.442695
    %v515 = vpow.pop %v514
    %v516 = vmul.f32 %v483, 1.442695
    %v517 = vpow.pop %v516
    %v518 = vmul.f32 %v484, 1.442695
    %v519 = vpow.pop %v518
    %v520 = vmul.f32 %v485, 1.442695
    %v521 = vpow.pop %v520
    %v522 = vmul.f32 %v486, 1.442695
    %v523 = vpow.pop %v522
    %v524 = vmul.f32 %v487, 1.442695
    %v525 = vpow.pop %v524
    %v526 = vmul.f32 %v488, 1.442695
    %v527 = vpow.pop %v526
    %v528 = vmul.f32 %v489, 1.442695
    %v529 = vpow.pop %v528
    %v530 = vmul.f32 %v490, 1.442695
    %v531 = vpow.pop %v530
    %v532 = vmul.f32 %v491, 1.442695
    %v533 = vpow.pop %v532
    %v534 = vmul.f32 %v492, 1.442695
    %v535 = vpow.pop %v534
    %v536 = vmul.f32 %v493, 1.442695
    %v537 = vpow.pop %v536
    %v538 = vmul.f32 %v494, 1.442695
    %v539 = vpow.pop %v538
    %v540 = vmul.f32 %v495, 1.442695
    %v541 = vpow.pop %v540
    %v542 = vmul.f32 %v496, 1.442695
    %v543 = vpow.pop %v542
    %v544 = vmul.f32 %v497, 1.442695
    %v545 = vpow.pop %v544
    %v546 = vmul.f32 %v498, 1.442695
    %v547 = vpow.pop %v546
    %v548 = vmul.f32 %v499, 1.442695
    %v549 = vpow.pop %v548
    %v550 = vmul.f32 %v500, 1.442695
    %v551 = vpow.pop %v550
    %v552 = vmul.f32 %v501, 1.442695
    %v553 = vpow.pop %v552
    %v554 = vmul.f32 %v502, 1.442695
    %v555 = vpow.pop %v554
    %v556 = vmul.f32 %v503, 1.442695
    %v557 = vpow.pop %v556
    %v558 = vmul.f32 %v504, 1.442695
    %v559 = vpow.pop %v558
    %v560 = vmul.f32 %v505, 1.442695
    %v561 = vpow.pop %v560
    %v562 = vmul.f32 %v506, 1.442695
    %v563 = vpow.pop %v562
    %v564 = vmul.f32 %v507, 1.442695
    %v565 = vpow.pop %v564
    %v566 = vmul.f32 %v508, 1.442695
    %v567 = vpow.pop %v566
    %v568 = vmul.f32 %v509, 1.442695
    %v569 = vpow.pop %v568
    %v570 = vmul.f32 %v510, 1.442695
    %v571 = vpow.pop %v570
    %v572 = vmul.f32 %v511, 1.442695
    %v573 = vpow.pop %v572
    %v574 = vmul.f32 %v512, 1.442695
    %v575 = vpow.pop %v574
    %v576 = vmul.f32 %v513, 1.442695
    %v577 = vpow.pop %v576
    %v578 = vadd.f32 %v515, 1.0
    %v579 = vadd.f32 %v517, 1.0
    %v580 = vadd.f32 %v519, 1.0
    %v581 = vadd.f32 %v521, 1.0
    %v582 = vadd.f32 %v523, 1.0
    %v583 = vadd.f32 %v525, 1.0
    %v584 = vadd.f32 %v527, 1.0
    %v585 = vadd.f32 %v529, 1.0
    %v586 = vadd.f32 %v531, 1.0
    %v587 = vadd.f32 %v533, 1.0
    %v588 = vadd.f32 %v535, 1.0
    %v589 = vadd.f32 %v537, 1.0
    %v590 = vadd.f32 %v539, 1.0
    %v591 = vadd.f32 %v541, 1.0
    %v592 = vadd.f32 %v543, 1.0
    %v593 = vadd.f32 %v545, 1.0
    %v594 = vadd.f32 %v547, 1.0
    %v595 = vadd.f32 %v549, 1.0
    %v596 = vadd.f32 %v551, 1.0
    %v597 = vadd.f32 %v553, 1.0
    %v598 = vadd.f32 %v555, 1.0
    %v599 = vadd.f32 %v557, 1.0
    %v600 = vadd.f32 %v559, 1.0
    %v601 = vadd.f32 %v561, 1.0
    %v602 = vadd.f32 %v563, 1.0
    %v603 = vadd.f32 %v565, 1.0
    %v604 = vadd.f32 %v567, 1.0
    %v605 = vadd.f32 %v569, 1.0
    %v606 = vadd.f32 %v571, 1.0
    %v607 = vadd.f32 %v573, 1.0
    %v608 = vadd.f32 %v575, 1.0
    %v609 = vadd.f32 %v577, 1.0
    %v610 = vrcp.pop %v578
    %v611 = vmul.f32 1.0, %v610
    %v612 = vrcp.pop %v579
    %v613 = vmul.f32 1.0, %v612
    %v614 = vrcp.pop %v580
    %v615 = vmul.f32 1.0, %v614
    %v616 = vrcp.pop %v581
    %v617 = vmul.f32 1.0, %v616
    %v618 = vrcp.pop %v582
    %v619 = vmul.f32 1.0, %v618
    %v620 = vrcp.pop %v583
    %v621 = vmul.f32 1.0, %v620
    %v622 = vrcp.pop %v584
    %v623 = vmul.f32 1.0, %v622
    %v624 = vrcp.pop %v585
    %v625 = vmul.f32 1.0, %v624
    %v626 = vrcp.pop %v586
    %v627 = vmul.f32 1.0, %v626
    %v628 = vrcp.pop %v587
    %v629 = vmul.f32 1.0, %v628
    %v630 = vrcp.pop %v588
    %v631 = vmul.f32 1.0, %v630
    %v632 = vrcp.pop %v589
    %v633 = vmul.f32 1.0, %v632
    %v634 = vrcp.pop %v590
    %v635 = vmul.f32 1.0, %v634
    %v636 = vrcp.pop %v591
    %v637 = vmul.f32 1.0, %v636
    %v638 = vrcp.pop %v592
    %v639 = vmul.f32 1.0, %v638
    %v640 = vrcp.pop %v593
    %v641 = vmul.f32 1.0, %v640
    %v642 = vrcp.pop %v594
    %v643 = vmul.f32 1.0, %v642
    %v644 = vrcp.pop %v595
    %v645 = vmul.f32 1.0, %v644
    %v646 = vrcp.pop %v596
    %v647 = vmul.f32 1.0, %v646
    %v648 = vrcp.pop %v597
    %v649 = vmul.f32 1.0, %v648
    %v650 = vrcp.pop %v598
    %v651 = vmul.f32 1.0, %v650
    %v652 = vrcp.pop %v599
    %v653 = vmul.f32 1.0, %v652
    %v654 = vrcp.pop %v600
    %v655 = vmul.f32 1.0, %v654
    %v656 = vrcp.pop %v601
    %v657 = vmul.f32 1.0, %v656
    %v658 = vrcp.pop %v602
    %v659 = vmul.f32 1.0, %v658
    %v660 = vrcp.pop %v603
    %v661 = vmul.f32 1.0, %v660
    %v662 = vrcp.pop %v604
    %v663 = vmul.f32 1.0, %v662
    %v664 = vrcp.pop %v605
    %v665 = vmul.f32 1.0, %v664
    %v666 = vrcp.pop %v606
    %v667 = vmul.f32 1.0, %v666
    %v668 = vrcp.pop %v607
    %v669 = vmul.f32 1.0, %v668
    %v670 = vrcp.pop %v608
    %v671 = vmul.f32 1.0, %v670
    %v672 = vrcp.pop %v609
    %v673 = vmul.f32 1.0, %v672
    %v674 = vmul.f32 %v450, %v611
    %v675 = vmul.f32 %v451, %v613
    %v676 = vmul.f32 %v452, %v615
    %v677 = vmul.f32 %v453, %v617
    %v678 = vmul.f32 %v454, %v619
    %v679 = vmul.f32 %v455, %v621
    %v680 = vmul.f32 %v456, %v623
    %v681 = vmul.f32 %v457, %v625
    %v682 = vmul.f32 %v458, %v627
    %v683 = vmul.f32 %v459, %v629
    %v684 = vmul.f32 %v460, %v631
    %v685 = vmul.f32 %v461, %v633
    %v686 = vmul.f32 %v462, %v635
    %v687 = vmul.f32 %v463, %v637
    %v688 = vmul.f32 %v464, %v639
    %v689 = vmul.f32 %v465, %v641
    %v690 = vmul.f32 %v466, %v643
    %v691 = vmul.f32 %v467, %v645
    %v692 = vmul.f32 %v468, %v647
    %v693 = vmul.f32 %v469, %v649
    %v694 = vmul.f32 %v470, %v651
    %v695 = vmul.f32 %v471, %v653
    %v696 = vmul.f32 %v472, %v655
    %v697 = vmul.f32 %v473, %v657
    %v698 = vmul.f32 %v474, %v659
    %v699 = vmul.f32 %v475, %v661
    %v700 = vmul.f32 %v476, %v663
    %v701 = vmul.f32 %v477, %v665
    %v702 = vmul.f32 %v478, %v667
    %v703 = vmul.f32 %v479, %v669
    %v704 = vmul.f32 %v480, %v671
    %v705 = vmul.f32 %v481, %v673
    %v706 = vld [vmem:[%s3] sm:$0x1]
    %707 = vmatprep.subr.mxu0 0.0
    %708 = vmatpush1.xpose.msra.mxu0 %v689
    %709 = vmatprep.subr.mxu0 0.0
    %710 = vmatpush1.xpose.msra.mxu0 %v688
    %711 = vmatprep.subr.mxu0 0.0
    %712 = vmatpush1.xpose.msra.mxu0 %v687
    %713 = vmatprep.subr.mxu0 0.0
    %714 = vmatpush1.xpose.msra.mxu0 %v686
    %715 = vmatprep.subr.mxu0 0.0
    %716 = vmatpush1.xpose.msra.mxu0 %v685
    %717 = vmatprep.subr.mxu0 0.0
    %718 = vmatpush1.xpose.msra.mxu0 %v684
    %719 = vmatprep.subr.mxu0 0.0
    %720 = vmatpush1.xpose.msra.mxu0 %v683
    %721 = vmatprep.subr.mxu0 0.0
    %722 = vmatpush1.xpose.msra.mxu0 %v682
    %723 = vmatprep.subr.mxu0 0.0
    %724 = vmatpush1.xpose.msra.mxu0 %v681
    %725 = vmatprep.subr.mxu0 0.0
    %726 = vmatpush1.xpose.msra.mxu0 %v680
    %727 = vmatprep.subr.mxu0 0.0
    %728 = vmatpush1.xpose.msra.mxu0 %v679
    %729 = vmatprep.subr.mxu0 0.0
    %730 = vmatpush1.xpose.msra.mxu0 %v678
    %731 = vmatprep.subr.mxu0 0.0
    %732 = vmatpush1.xpose.msra.mxu0 %v677
    %733 = vmatprep.subr.mxu0 0.0
    %734 = vmatpush1.xpose.msra.mxu0 %v676
    %735 = vmatprep.subr.mxu0 0.0
    %736 = vmatpush1.xpose.msra.mxu0 %v675
    %737 = vmatprep.subr.mxu0 0.0
    %738 = vmatpush1.xpose.msra.mxu0 %v674
    %739 = vmatprep.subr.mxu0 0.0
    %740 = vmatpush2.xpose.msra.mxu0 %v705
    %741 = vmatprep.subr.mxu0 0.0
    %742 = vmatpush2.xpose.msra.mxu0 %v704
    %743 = vmatprep.subr.mxu0 0.0
    %744 = vmatpush2.xpose.msra.mxu0 %v703
    %745 = vmatprep.subr.mxu0 0.0
    %746 = vmatpush2.xpose.msra.mxu0 %v702
    %747 = vmatprep.subr.mxu0 0.0
    %748 = vmatpush2.xpose.msra.mxu0 %v701
    %749 = vmatprep.subr.mxu0 0.0
    %750 = vmatpush2.xpose.msra.mxu0 %v700
    %751 = vmatprep.subr.mxu0 0.0
    %752 = vmatpush2.xpose.msra.mxu0 %v699
    %753 = vmatprep.subr.mxu0 0.0
    %754 = vmatpush2.xpose.msra.mxu0 %v698
    %755 = vmatprep.subr.mxu0 0.0
    %756 = vmatpush2.xpose.msra.mxu0 %v697
    %757 = vmatprep.subr.mxu0 0.0
    %758 = vmatpush2.xpose.msra.mxu0 %v696
    %759 = vmatprep.subr.mxu0 0.0
    %760 = vmatpush2.xpose.msra.mxu0 %v695
    %761 = vmatprep.subr.mxu0 0.0
    %762 = vmatpush2.xpose.msra.mxu0 %v694
    %763 = vmatprep.subr.mxu0 0.0
    %764 = vmatpush2.xpose.msra.mxu0 %v693
    %765 = vmatprep.subr.mxu0 0.0
    %766 = vmatpush2.xpose.msra.mxu0 %v692
    %767 = vmatprep.subr.mxu0 0.0
    %768 = vmatpush2.xpose.msra.mxu0 %v691
    %769 = vmatprep.subr.mxu0 0.0
    %770 = vmatpush2.xpose.msra.mxu0 %v690
    %771 = vmatprep.mubr.f32.mxu0 0.0
    %772 = vmatmul.mubr.f32.gmra.mxu0 %v706
    %v773 = vpop.f32.mrf.mxu0
    %v774 = vadd.f32 0.0, %v773
    %v775 = vpop.f32.mrf.mxu0
    %v776 = vadd.f32 0.0, %v775
    %777 = vdwg.mxu0
    %vm778 = vcmask 1040384
    %v779 = vsel %vm778, %v774, -inf
    %v780 = vsel %vm778, %v776, -inf
    %v781 = vmax.f32 %v779, %v780
    %782 = vmax.xlane.f32.xlu0 %v781
    %v783 = vpop.xlane.xlu0 %782
    %v784 = vsub.f32 %v774, %v783
    %v785 = vsub.f32 %v776, %v783
    %v786 = vmul.f32 %v784, 1.442695
    %v787 = vpow.pop %v786
    %v788 = vmul.f32 %v785, 1.442695
    %v789 = vpow.pop %v788
    %v790 = vsel %vm778, %v787, 0.0
    %v791 = vsel %vm778, %v789, 0.0
    %v792 = vadd.f32 %v790, %v791
    %793 = vadd.xlane.f32.xlu0 %v792
    %v794 = vpop.xlane.xlu0 %793
    %v795 = vrcp.pop %v794
    %v796 = vmul.f32 %v787, %v795
    %v797 = vmul.f32 %v789, %v795
    %v800 = vcombine.low %v796, %v797
    %v802 = vunpack.c.l.s4 1966171168
    %v803 = vunpack.c.0.s8 %v802
    %v804 = vlaneseq
    %v805 = vshrl.u32 %v804, 7
    %v806 = vsub.s32 %v803, %v805
    %v807 = vrot.slane %v800, %v806
    %v809 = vunpack.c.l.s4 1966171168
    %v810 = vunpack.c.0.s8 %v809
    %v811 = vlaneseq
    %v812 = vshrl.u32 %v811, 7
    %v813 = vsub.s32 %v810, %v812
    %v814 = vrot.slane %v807, %v813
    %v816 = vlaneseq
    %vm817 = vcmp.ge.s32.totalorder %v816, 0
    %vm818 = vcmp.lt.s32.totalorder %v816, 256
    %vm819 = vmand %vm817, %vm818
    %820 = vst.msk [vmem:[#allocation2] sm:$0x3] %vm819, %v814
    %v821 = vpack.c.bf16 %v796, %v796
    %v822 = vpack.c.bf16 %v797, %v797
    %823 = vmatprep.subr.bf16.mxu0 0
    %824 = vmatpush1.bf16.msra.mxu0 %v152
    %825 = vmatprep.subr.bf16.mxu0 0
    %826 = vmatpush1.bf16.msra.mxu0 %v151
    %827 = vmatprep.subr.bf16.mxu0 0
    %828 = vmatpush1.bf16.msra.mxu0 %v150
    %829 = vmatprep.subr.bf16.mxu0 0
    %830 = vmatpush1.bf16.msra.mxu0 %v149
    %831 = vmatprep.subr.bf16.mxu0 0
    %832 = vmatpush1.bf16.msra.mxu0 %v148
    %833 = vmatprep.subr.bf16.mxu0 0
    %834 = vmatpush1.bf16.msra.mxu0 %v147
    %835 = vmatprep.subr.bf16.mxu0 0
    %836 = vmatpush1.bf16.msra.mxu0 %v146
    %837 = vmatprep.subr.bf16.mxu0 0
    %838 = vmatpush1.bf16.msra.mxu0 %v145
    %839 = vmatprep.subr.bf16.mxu0 0
    %840 = vmatpush2.bf16.msra.mxu0 %v160
    %841 = vmatprep.subr.bf16.mxu0 0
    %842 = vmatpush2.bf16.msra.mxu0 %v159
    %843 = vmatprep.subr.bf16.mxu0 0
    %844 = vmatpush2.bf16.msra.mxu0 %v158
    %845 = vmatprep.subr.bf16.mxu0 0
    %846 = vmatpush2.bf16.msra.mxu0 %v157
    %847 = vmatprep.subr.bf16.mxu0 0
    %848 = vmatpush2.bf16.msra.mxu0 %v156
    %849 = vmatprep.subr.bf16.mxu0 0
    %850 = vmatpush2.bf16.msra.mxu0 %v155
    %851 = vmatprep.subr.bf16.mxu0 0
    %852 = vmatpush2.bf16.msra.mxu0 %v154
    %853 = vmatprep.subr.bf16.mxu0 0
    %854 = vmatpush2.bf16.msra.mxu0 %v153
    %855 = vmatprep.mubr.bf16.mxu0 %v822
    %856 = vmatmul.mubr.bf16.gmra.mxu0 %v821
    %v857 = vpop.f32.mrf.mxu0
    %v858 = vadd.f32 0.0, %v857
    %v859 = vpop.f32.mrf.mxu0
    %v860 = vpop.f32.mrf.mxu0
    %v861 = vpop.f32.mrf.mxu0
    %862 = vdwg.mxu0
    %863 = vst [vmem:[%s4] sm:$0x1] %v858
    // Predicated region
    $region18: #{gated_attention.1} parent=1 // pred_check
      _
    $region19: #{gated_attention.1} parent=1 // pred_check_branch
      %865 = sbr.rel (0) target = $region21
    $region20: #{gated_attention.1} parent=1 // pred_region
      _
    $region21: #{gated_attention.1} parent=1 // pred_fallthru
      _
    // Predicated region
    $region22: #{gated_attention.1} parent=1 // pred_check
      _
    $region23: #{gated_attention.1} parent=1 // pred_check_branch
      %867 = sbr.rel (0) target = $region25
    $region24: #{gated_attention.1} parent=1 // pred_region
      %s869 = ssub.s32 32, 32
      %870 = vsyncadd [#allocation3], %s869
      %s872 = sshll.u32 [#allocation2], 4
      %s873 = int_to_ptr.vmem [resolvable:$true] %s872
      %875 = dma.vmem_to_hbm [thread:$0]  %s873, 32, %s5, [#allocation3]
    $region25: #{gated_attention.1} parent=1 // pred_fallthru
      _
    // Predicated region
    $region26: #{gated_attention.1} parent=1 // pred_check
      _
    $region27: #{gated_attention.1} parent=1 // pred_check_branch
      %877 = sbr.rel (0) target = $region29
    $region28: #{gated_attention.1} parent=1 // pred_region
      _
    $region29: #{gated_attention.1} parent=1 // pred_fallthru
      _
    // Predicated region
    $region30: #{gated_attention.1} parent=1 // pred_check
      _
    $region31: #{gated_attention.1} parent=1 // pred_check_branch
      %879 = sbr.rel (0) target = $region33
    $region32: #{gated_attention.1} parent=1 // pred_region
      %880 = dma.done [#allocation3], 32
    $region33: #{gated_attention.1} parent=1 // pred_fallthru
      _
    %881 = vsyncpa [#allocation3], 1

</llo_original>
